<compile_context>
chip_gen: v7x
topology: tpu7x:2x2x1
jax: 0.10.0
libtpu: 0.0.40
codegen_flags: <defaults>
</compile_context>

<pallas_src>
import functools

import jax
import jax.numpy as jnp
from jax import lax
from jax.experimental import pallas as pl
from jax.experimental.pallas import tpu as pltpu


def _round_up(x, m):
    return ((x + m - 1) // m) * m


# ---------------------------------------------------------------------------
# Kernel 1: tiled spatial sum/max reduction + fused shared-MLP sigmoid gate
# ---------------------------------------------------------------------------

def _ca_reduce_gate_kernel(x_ref, w1_ref, w2_ref, gate_ref, sum_acc, max_acc,
                           *, hw, thw, masked):
    t = pl.program_id(1)

    @pl.when(t == 0)
    def _init():
        sum_acc[...] = jnp.zeros_like(sum_acc)
        max_acc[...] = jnp.full_like(max_acc, -jnp.inf)

    x = x_ref[0].astype(jnp.float32)                        # (C, thw)
    if masked:                                              # ragged tail tile
        col = lax.broadcasted_iota(jnp.int32, x.shape, 1) + t * thw
        valid = col < hw
        x_sum = jnp.where(valid, x, 0.0)
        x_max = jnp.where(valid, x, -jnp.inf)
    else:
        x_sum = x
        x_max = x

    sum_acc[...] = sum_acc[...] + jnp.sum(x_sum, axis=-1, keepdims=True)
    max_acc[...] = jnp.maximum(max_acc[...], jnp.max(x_max, axis=-1, keepdims=True))

    @pl.when(t == pl.num_programs(1) - 1)
    def _finalize():
        w1 = w1_ref[...]                                    # (Cr, C)
        w2 = w2_ref[...]                                    # (C, Cr)
        avg = sum_acc[...] * (1.0 / hw)                     # (C, 1)
        mx = max_acc[...]                                   # (C, 1)

        def mlp(v):                                         # shared fc2(relu(fc1(v)))
            h = jnp.maximum(jnp.dot(w1, v, preferred_element_type=jnp.float32), 0.0)
            return jnp.dot(w2, h, preferred_element_type=jnp.float32)

        gate_ref[0] = jax.nn.sigmoid(mlp(avg) + mlp(mx)).astype(gate_ref.dtype)


# ---------------------------------------------------------------------------
# Kernel 2: apply per-channel gate (lane-dense over HW)
# ---------------------------------------------------------------------------

def _ca_apply_kernel(x_ref, gate_ref, o_ref):
    o_ref[...] = (x_ref[...] * gate_ref[...]).astype(o_ref.dtype)


# ---------------------------------------------------------------------------
# Wrapper
# ---------------------------------------------------------------------------

def channel_attention(x, w1, w2, *, hw_tile_cap=8192):
    """ChannelAttention forward.

    x : (B, C, H, W)  -- NCHW, as in the PyTorch module.
    w1: (C // ratio, C)   fc1 1x1-conv weight (no bias).
    w2: (C, C // ratio)   fc2 1x1-conv weight (no bias).
    """
    B, C, H, W = x.shape
    Cr = w1.shape[0]
    assert w1.shape == (Cr, C), "fc1 weight must be (C//ratio, C)"
    assert w2.shape == (C, Cr), "fc2 output width must equal the channel count of x"

    HW = H * W
    # Tile HW: multiple of 128 for lane-dense blocks, capped to stay VMEM-safe
    # (thw=8192, C=64, f32 -> 2 MiB per block, fine double-buffered on all gens).
    thw = min(hw_tile_cap, _round_up(HW, 128))
    HWp = _round_up(HW, thw)
    nt = HWp // thw

    xf = x.reshape(B, C, HW)
    if HWp != HW:
        xf = jnp.pad(xf, ((0, 0), (0, 0), (0, HWp - HW)))

    # Pass 1: pooled stats + fused MLP gate -> (B, C, 1)
    gate = pl.pallas_call(
        functools.partial(_ca_reduce_gate_kernel, hw=HW, thw=thw,
                          masked=(HWp != HW)),
        out_shape=jax.ShapeDtypeStruct((B, C, 1), jnp.float32),
        grid=(B, nt),
        in_specs=[
            pl.BlockSpec((1, C, thw), lambda b, t: (b, 0, t)),
            pl.BlockSpec((Cr, C), lambda b, t: (0, 0)),
            pl.BlockSpec((C, Cr), lambda b, t: (0, 0)),
        ],
        out_specs=pl.BlockSpec((1, C, 1), lambda b, t: (b, 0, 0)),
        scratch_shapes=[
            pltpu.VMEM((C, 1), jnp.float32),   # spatial sum accumulator
            pltpu.VMEM((C, 1), jnp.float32),   # spatial max accumulator
        ],
        compiler_params=pltpu.CompilerParams(
            dimension_semantics=("parallel", "arbitrary")),
    )(xf, w1, w2)

    # Pass 2: out = x * gate (per-channel broadcast over HW)
    out = pl.pallas_call(
        _ca_apply_kernel,
        out_shape=jax.ShapeDtypeStruct((B, C, HWp), x.dtype),
        grid=(B, nt),
        in_specs=[
            pl.BlockSpec((1, C, thw), lambda b, t: (b, 0, t)),
            pl.BlockSpec((1, C, 1), lambda b, t: (b, 0, 0)),
        ],
        out_specs=pl.BlockSpec((1, C, thw), lambda b, t: (b, 0, t)),
        compiler_params=pltpu.CompilerParams(
            dimension_semantics=("parallel", "parallel")),
    )(xf, gate)

    if HWp != HW:
        out = out[:, :, :HW]
    return out.reshape(B, C, H, W)


# ---------------------------------------------------------------------------
# Pure-JAX reference (mirrors the PyTorch forward exactly)
# ---------------------------------------------------------------------------

def channel_attention_ref(x, w1, w2):
    avg = jnp.mean(x, axis=(2, 3))                          # (B, C)
    mx = jnp.max(x, axis=(2, 3))                            # (B, C)

    def mlp(v):
        h = jax.nn.relu(v @ w1.T)                           # (B, Cr)
        return h @ w2.T                                     # (B, C)

    gate = jax.nn.sigmoid(mlp(avg) + mlp(mx))
    return x * gate[:, :, None, None]


# ---------------------------------------------------------------------------

if __name__ == "__main__":
    key = jax.random.PRNGKey(0)
    kx, k1, k2 = jax.random.split(key, 3)

    B, C, H, W, ratio = 2, 64, 16, 16, 2
    x = jax.random.normal(kx, (B, C, H, W), jnp.float32)
    w1 = 0.05 * jax.random.normal(k1, (C // ratio, C), jnp.float32)   # fc1
    w2 = 0.05 * jax.random.normal(k2, (C, C // ratio), jnp.float32)   # fc2

    fwd = jax.jit(channel_attention)
    out = fwd(x, w1, w2)
    jax.block_until_ready(out)

    ref = channel_attention_ref(x, w1, w2)
    assert out.shape == (B, C, H, W) and out.dtype == jnp.float32
    max_err = float(jnp.max(jnp.abs(out - ref)))
    assert max_err < 1e-4, f"max abs err {max_err}"
    print("KERNEL_OK")
</pallas_src>

<mosaic_0001>
module attributes {stable_mosaic.version = 11 : i64} {
  func.func @_ca_apply_kernel(%arg0: i32, %arg1: i32, %arg2: memref<1x64x256xf32, #tpu.memory_space<vmem>>, %arg3: memref<1x64x1xf32, #tpu.memory_space<vmem>>, %arg4: memref<1x64x256xf32, #tpu.memory_space<vmem>>) attributes {dimension_semantics = [#tpu.dimension_semantics<parallel>, #tpu.dimension_semantics<parallel>], iteration_bounds = array<i64: 2, 1>, scalar_prefetch = 0 : i64, scratch_operands = 0 : i64, tpu.core_type = #tpu.core_type<tc>, window_params = [{transform_indices = @transform_0, window_bounds = array<i64: 1, 64, 256>}, {transform_indices = @transform_1, window_bounds = array<i64: 1, 64, 1>}, {transform_indices = @transform_2, window_bounds = array<i64: 1, 64, 256>}]} {
    %c0 = arith.constant 0 : index
    %c0_0 = arith.constant 0 : index
    %c0_1 = arith.constant 0 : index
    %0 = vector.load %arg2[%c0, %c0_0, %c0_1] : memref<1x64x256xf32, #tpu.memory_space<vmem>>, vector<1x64x256xf32>
    %c0_2 = arith.constant 0 : index
    %c0_3 = arith.constant 0 : index
    %c0_4 = arith.constant 0 : index
    %1 = vector.load %arg3[%c0_2, %c0_3, %c0_4] : memref<1x64x1xf32, #tpu.memory_space<vmem>>, vector<1x64x1xf32>
    %2 = vector.broadcast %1 : vector<1x64x1xf32> to vector<1x64x256xf32>
    %3 = arith.mulf %0, %2 : vector<1x64x256xf32>
    %c0_5 = arith.constant 0 : index
    %c0_6 = arith.constant 0 : index
    %c0_7 = arith.constant 0 : index
    %4 = vector.load %arg4[%c0_5, %c0_6, %c0_7] : memref<1x64x256xf32, #tpu.memory_space<vmem>>, vector<1x64x256xf32>
    tpu.vector_store %arg4[%c0_5, %c0_6, %c0_7], %3 {strides = array<i32>} : memref<1x64x256xf32, #tpu.memory_space<vmem>>, vector<1x64x256xf32>,
    return
  }
  func.func @transform_0(%arg0: i32, %arg1: i32) -> (i32, i32, i32) {
    %c0_i32 = arith.constant 0 : i32
    %c0_i32_0 = arith.constant 0 : i32
    return %arg0, %c0_i32, %arg1 : i32, i32, i32
  }
  func.func @transform_1(%arg0: i32, %arg1: i32) -> (i32, i32, i32) {
    %c0_i32 = arith.constant 0 : i32
    %c0_i32_0 = arith.constant 0 : i32
    %c0_i32_1 = arith.constant 0 : i32
    return %arg0, %c0_i32, %c0_i32_0 : i32, i32, i32
  }
  func.func @transform_2(%arg0: i32, %arg1: i32) -> (i32, i32, i32) {
    %c0_i32 = arith.constant 0 : i32
    %c0_i32_0 = arith.constant 0 : i32
    return %arg0, %c0_i32, %arg1 : i32, i32, i32
  }
}

module attributes {stable_mosaic.version = 11 : i64} {
  func.func @_ca_reduce_gate_kernel(%arg0: i32, %arg1: i32, %arg2: memref<1x64x256xf32, #tpu.memory_space<vmem>>, %arg3: memref<32x64xf32, #tpu.memory_space<vmem>>, %arg4: memref<64x32xf32, #tpu.memory_space<vmem>>, %arg5: memref<1x64x1xf32, #tpu.memory_space<vmem>>, %arg6: memref<64x1xf32, #tpu.memory_space<vmem>>, %arg7: memref<64x1xf32, #tpu.memory_space<vmem>>) attributes {dimension_semantics = [#tpu.dimension_semantics<parallel>, #tpu.dimension_semantics<arbitrary>], iteration_bounds = array<i64: 2, 1>, scalar_prefetch = 0 : i64, scratch_operands = 2 : i64, tpu.core_type = #tpu.core_type<tc>, window_params = [{transform_indices = @transform_0, window_bounds = array<i64: 1, 64, 256>}, {pipeline_mode = #tpu.pipeline_mode<synchronous>, transform_indices = @transform_1, window_bounds = array<i64: 32, 64>}, {pipeline_mode = #tpu.pipeline_mode<synchronous>, transform_indices = @transform_2, window_bounds = array<i64: 64, 32>}, {transform_indices = @transform_3, window_bounds = array<i64: 1, 64, 1>}]} {
    %c0_i32 = arith.constant 0 : i32
    %0 = arith.cmpi eq, %arg1, %c0_i32 : i32
    %1 = arith.extui %0 : i1 to i32
    %c0_i32_0 = arith.constant 0 : i32
    %2 = arith.cmpi ne, %1, %c0_i32_0 : i32
    scf.if %2 {
      %cst_14 = arith.constant 0.000000e+00 : f32
      %18 = vector.broadcast %cst_14 : f32 to vector<64x1xf32>
      %c0_15 = arith.constant 0 : index
      %c0_16 = arith.constant 0 : index
      %19 = vector.load %arg6[%c0_15, %c0_16] : memref<64x1xf32, #tpu.memory_space<vmem>>, vector<64x1xf32>
      tpu.vector_store %arg6[%c0_15, %c0_16], %18 {strides = array<i32>} : memref<64x1xf32, #tpu.memory_space<vmem>>, vector<64x1xf32>,
      %cst_17 = arith.constant 0xFF800000 : f32
      %20 = vector.broadcast %cst_17 : f32 to vector<64x1xf32>
      %c0_18 = arith.constant 0 : index
      %c0_19 = arith.constant 0 : index
      %21 = vector.load %arg7[%c0_18, %c0_19] : memref<64x1xf32, #tpu.memory_space<vmem>>, vector<64x1xf32>
      tpu.vector_store %arg7[%c0_18, %c0_19], %20 {strides = array<i32>} : memref<64x1xf32, #tpu.memory_space<vmem>>, vector<64x1xf32>,
    } else {
    }
    %c0 = arith.constant 0 : index
    %c0_1 = arith.constant 0 : index
    %c0_2 = arith.constant 0 : index
    %3 = vector.load %arg2[%c0, %c0_1, %c0_2] : memref<1x64x256xf32, #tpu.memory_space<vmem>>, vector<1x64x256xf32>
    %4 = vector.shape_cast %3 : vector<1x64x256xf32> to vector<64x256xf32>
    %c0_3 = arith.constant 0 : index
    %c0_4 = arith.constant 0 : index
    %5 = vector.load %arg6[%c0_3, %c0_4] : memref<64x1xf32, #tpu.memory_space<vmem>>, vector<64x1xf32>
    %cst = arith.constant dense<0.000000e+00> : vector<64xf32>
    %6 = vector.multi_reduction <add>, %4, %cst [1] : vector<64x256xf32> to vector<64xf32>
    %7 = vector.shape_cast %6 : vector<64xf32> to vector<64x1xf32>
    %8 = arith.addf %5, %7 : vector<64x1xf32>
    %c0_5 = arith.constant 0 : index
    %c0_6 = arith.constant 0 : index
    %9 = vector.load %arg6[%c0_5, %c0_6] : memref<64x1xf32, #tpu.memory_space<vmem>>, vector<64x1xf32>
    tpu.vector_store %arg6[%c0_5, %c0_6], %8 {strides = array<i32>} : memref<64x1xf32, #tpu.memory_space<vmem>>, vector<64x1xf32>,
    %c0_7 = arith.constant 0 : index
    %c0_8 = arith.constant 0 : index
    %10 = vector.load %arg7[%c0_7, %c0_8] : memref<64x1xf32, #tpu.memory_space<vmem>>, vector<64x1xf32>
    %cst_9 = arith.constant dense<0xFF800000> : vector<64xf32>
    %11 = vector.multi_reduction <maximumf>, %4, %cst_9 [1] : vector<64x256xf32> to vector<64xf32>
    %12 = vector.shape_cast %11 : vector<64xf32> to vector<64x1xf32>
    %13 = arith.maximumf %10, %12 : vector<64x1xf32>
    %c0_10 = arith.constant 0 : index
    %c0_11 = arith.constant 0 : index
    %14 = vector.load %arg7[%c0_10, %c0_11] : memref<64x1xf32, #tpu.memory_space<vmem>>, vector<64x1xf32>
    tpu.vector_store %arg7[%c0_10, %c0_11], %13 {strides = array<i32>} : memref<64x1xf32, #tpu.memory_space<vmem>>, vector<64x1xf32>,
    %c0_i32_12 = arith.constant 0 : i32
    %15 = arith.cmpi eq, %arg1, %c0_i32_12 : i32
    %16 = arith.extui %15 : i1 to i32
    %c0_i32_13 = arith.constant 0 : i32
    %17 = arith.cmpi ne, %16, %c0_i32_13 : i32
    scf.if %17 {
      %c0_14 = arith.constant 0 : index
      %c0_15 = arith.constant 0 : index
      %18 = vector.load %arg3[%c0_14, %c0_15] : memref<32x64xf32, #tpu.memory_space<vmem>>, vector<32x64xf32>
      %c0_16 = arith.constant 0 : index
      %c0_17 = arith.constant 0 : index
      %19 = vector.load %arg4[%c0_16, %c0_17] : memref<64x32xf32, #tpu.memory_space<vmem>>, vector<64x32xf32>
      %c0_18 = arith.constant 0 : index
      %c0_19 = arith.constant 0 : index
      %20 = vector.load %arg6[%c0_18, %c0_19] : memref<64x1xf32, #tpu.memory_space<vmem>>, vector<64x1xf32>
      %cst_20 = arith.constant 3.906250e-03 : f32
      %21 = vector.broadcast %cst_20 : f32 to vector<64x1xf32>
      %22 = arith.mulf %20, %21 : vector<64x1xf32>
      %c0_21 = arith.constant 0 : index
      %c0_22 = arith.constant 0 : index
      %23 = vector.load %arg7[%c0_21, %c0_22] : memref<64x1xf32, #tpu.memory_space<vmem>>, vector<64x1xf32>
      %cst_23 = arith.constant dense<0.000000e+00> : vector<32x1xf32>
      %24 = tpu.matmul %18, %22, %cst_23 {dimension_numbers = #tpu.dot_dimension_numbers<[1], [0], [0], [1], [0, 0, 1, 1], [], []>} : vector<32x64xf32>, vector<64x1xf32>, vector<32x1xf32> -> vector<32x1xf32>
      %cst_24 = arith.constant 0.000000e+00 : f32
      %25 = vector.broadcast %cst_24 : f32 to vector<32x1xf32>
      %26 = arith.maximumf %24, %25 : vector<32x1xf32>
      %cst_25 = arith.constant dense<0.000000e+00> : vector<64x1xf32>
      %27 = tpu.matmul %19, %26, %cst_25 {dimension_numbers = #tpu.dot_dimension_numbers<[1], [0], [0], [1], [0, 0, 1, 1], [], []>} : vector<64x32xf32>, vector<32x1xf32>, vector<64x1xf32> -> vector<64x1xf32>
      %cst_26 = arith.constant dense<0.000000e+00> : vector<32x1xf32>
      %28 = tpu.matmul %18, %23, %cst_26 {dimension_numbers = #tpu.dot_dimension_numbers<[1], [0], [0], [1], [0, 0, 1, 1], [], []>} : vector<32x64xf32>, vector<64x1xf32>, vector<32x1xf32> -> vector<32x1xf32>
      %cst_27 = arith.constant 0.000000e+00 : f32
      %29 = vector.broadcast %cst_27 : f32 to vector<32x1xf32>
      %30 = arith.maximumf %28, %29 : vector<32x1xf32>
      %cst_28 = arith.constant dense<0.000000e+00> : vector<64x1xf32>
      %31 = tpu.matmul %19, %30, %cst_28 {dimension_numbers = #tpu.dot_dimension_numbers<[1], [0], [0], [1], [0, 0, 1, 1], [], []>} : vector<64x32xf32>, vector<32x1xf32>, vector<64x1xf32> -> vector<64x1xf32>
      %32 = arith.addf %27, %31 : vector<64x1xf32>
      %33 = arith.negf %32 : vector<64x1xf32>
      %34 = math.exp %33 : vector<64x1xf32>
      %cst_29 = arith.constant 1.000000e+00 : f32
      %35 = vector.broadcast %cst_29 : f32 to vector<64x1xf32>
      %36 = arith.addf %35, %34 : vector<64x1xf32>
      %37 = arith.divf %35, %36 : vector<64x1xf32>
      %c0_30 = arith.constant 0 : index
      %c0_31 = arith.constant 0 : index
      %c0_32 = arith.constant 0 : index
      %38 = vector.load %arg5[%c0_30, %c0_31, %c0_32] : memref<1x64x1xf32, #tpu.memory_space<vmem>>, vector<1x64x1xf32>
      %39 = vector.shape_cast %38 : vector<1x64x1xf32> to vector<64x1xf32>
      %40 = vector.shape_cast %37 : vector<64x1xf32> to vector<1x64x1xf32>
      tpu.vector_store %arg5[%c0_30, %c0_31, %c0_32], %40 {strides = array<i32>} : memref<1x64x1xf32, #tpu.memory_space<vmem>>, vector<1x64x1xf32>,
    } else {
    }
    return
  }
  func.func @transform_0(%arg0: i32, %arg1: i32) -> (i32, i32, i32) {
    %c0_i32 = arith.constant 0 : i32
    %c0_i32_0 = arith.constant 0 : i32
    return %arg0, %c0_i32, %arg1 : i32, i32, i32
  }
  func.func @transform_1(%arg0: i32, %arg1: i32) -> (i32, i32) {
    %c0_i32 = arith.constant 0 : i32
    %c0_i32_0 = arith.constant 0 : i32
    %c0_i32_1 = arith.constant 0 : i32
    return %c0_i32, %c0_i32_0 : i32, i32
  }
  func.func @transform_2(%arg0: i32, %arg1: i32) -> (i32, i32) {
    %c0_i32 = arith.constant 0 : i32
    %c0_i32_0 = arith.constant 0 : i32
    %c0_i32_1 = arith.constant 0 : i32
    return %c0_i32, %c0_i32_0 : i32, i32
  }
  func.func @transform_3(%arg0: i32, %arg1: i32) -> (i32, i32, i32) {
    %c0_i32 = arith.constant 0 : i32
    %c0_i32_0 = arith.constant 0 : i32
    %c0_i32_1 = arith.constant 0 : i32
    return %arg0, %c0_i32, %c0_i32_0 : i32, i32, i32
  }
}

</mosaic_0001>

<llo_original>
// kernel: channel_attention.3
$region0: #{channel_attention.3}
  #allocation0 [shape = 'u32[]', space=smem, size = 0x4, offset = 0x4, fixed_abs, tag = 'smem constant byte address 0x4 - core index']
  #allocation1 [shape = 'u32[144,128]{1,0:T(1,128)}', space=vmem, size = 0x12000, scoped, tag = 'internal scratch']
  %s0 = inlined_call_operand.vmem [shape: f32[2,64,256], index: 0, kind: input, shape index: {}]
  %s1 = inlined_call_operand.vmem [shape: f32[2,64,1], index: 1, kind: input, shape index: {}]
  %s2 = inlined_call_operand.vmem [shape: f32[2,64,256], index: 2, kind: output, shape index: {}]
  %s3 = sld [smem:[#allocation0]]
  $region41: #{channel_attention.3} parent=0
    _
  %s5 = ssub.s32 1, %s3
  %s6 = scalar_select 0, %s5, %s3
  loop: start=0, step=1, limit=4
  $region2: #{channel_attention.3} parent=0 // loop_pre_header
    _
  $region3: #{channel_attention.3} parent=0 // loop_header
    %s8 = sphi 0, %s12
    %p9 = scmp.ge.s32.totalorder %s8, 4
    %s15 = sphi 0, %s27
    %s16 = sphi 0, %s23
    %s17 = sphi 0, %s15
    %s18 = sphi 0, %s16
    %s19 = sphi 0, %s17
    %s20 = sphi 0, %s18
    %s32 = sphi 0, %s34
    %s35 = sphi 0, %s32
    %s36 = sphi 0, %s35
    %s52 = sphi 0, %s36
    %s58 = sphi 0, %s60
    %s61 = sphi 0, %s58
    %s62 = sphi 0, %s61
    %s78 = sphi 0, %s62
    %s86 = sphi 0, %s88
    %s89 = sphi 0, %s86
    %s90 = sphi 0, %s89
    %s106 = sphi 0, %s90
  $region4: #{channel_attention.3} parent=0 // loop_header_branch
    %11 = sbr.rel (%p9) target = $region8
  $region5: #{channel_attention.3} parent=0 // loop_body
    %s13 = ssub.s32 %s8, 1
    %s14 = ssub.s32 %s8, 2
    %s21 = sadd.s32 1, %s16
    %p22 = scmp.ge.s32.totalorder %s21, 1
    %s23 = scalar_select %p22, 0, %s21
    %s24 = sadd.s32 1, %s15
    %s25 = scalar_select %p22, %s24, %s15
    %p26 = scmp.ge.s32.totalorder %s25, 2
    %s27 = scalar_select %p26, 0, %s25
    %s28 = ssub.s32 %s15, %s27
    %s29 = ssub.s32 %s16, %s23
    %s30 = sor.u32 %s28, %s29
    %p31 = scmp.eq.s32.totalorder %s30, 0
    %s33 = sadd.s32 %s32, 1
    %s34 = scalar_select %p31, %s32, %s33
    %p37 = pneg %p31
    %p38 = scmp.eq.s32.totalorder %s8, 1
    %p39 = por %p37, %p38
    %p40 = scmp.ne.s32.totalorder %s32, %s35
    %p41 = scmp.eq.s32.totalorder %s8, 0
    %p42 = por %p40, %p41
    %p43 = scmp.ne.s32.totalorder %s32, %s35
    %p44 = scmp.eq.s32.totalorder %s13, 1
    %p45 = por %p43, %p44
    %p46 = scmp.ne.s32.totalorder %s35, %s36
    %p47 = scmp.eq.s32.totalorder %s13, 0
    %p48 = por %p46, %p47
    %p49 = scmp.ne.s32.totalorder %s35, %s36
    %p50 = scmp.eq.s32.totalorder %s14, 1
    %p51 = por %p49, %p50
    %p53 = scmp.ne.s32.totalorder %s36, %s52
    %p54 = scmp.eq.s32.totalorder %s14, 0
    %p55 = por %p53, %p54
    %s56 = ssub.s32 %s15, %s27
    %p57 = scmp.eq.s32.totalorder %s56, 0
    %s59 = sadd.s32 %s58, 1
    %s60 = scalar_select %p57, %s58, %s59
    %p63 = pneg %p57
    %p64 = scmp.eq.s32.totalorder %s8, 1
    %p65 = por %p63, %p64
    %p66 = scmp.ne.s32.totalorder %s58, %s61
    %p67 = scmp.eq.s32.totalorder %s8, 0
    %p68 = por %p66, %p67
    %p69 = scmp.ne.s32.totalorder %s58, %s61
    %p70 = scmp.eq.s32.totalorder %s13, 1
    %p71 = por %p69, %p70
    %p72 = scmp.ne.s32.totalorder %s61, %s62
    %p73 = scmp.eq.s32.totalorder %s13, 0
    %p74 = por %p72, %p73
    %p75 = scmp.ne.s32.totalorder %s61, %s62
    %p76 = scmp.eq.s32.totalorder %s14, 1
    %p77 = por %p75, %p76
    %p79 = scmp.ne.s32.totalorder %s62, %s78
    %p80 = scmp.eq.s32.totalorder %s14, 0
    %p81 = por %p79, %p80
    %s82 = ssub.s32 %s15, %s27
    %s83 = ssub.s32 %s16, %s23
    %s84 = sor.u32 %s82, %s83
    %p85 = scmp.eq.s32.totalorder %s84, 0
    %s87 = sadd.s32 %s86, 1
    %s88 = scalar_select %p85, %s86, %s87
    %p91 = pneg %p85
    %p92 = scmp.eq.s32.totalorder %s8, 1
    %p93 = por %p91, %p92
    %p94 = scmp.ne.s32.totalorder %s86, %s89
    %p95 = scmp.eq.s32.totalorder %s8, 0
    %p96 = por %p94, %p95
    %p97 = scmp.ne.s32.totalorder %s86, %s89
    %p98 = scmp.eq.s32.totalorder %s13, 1
    %p99 = por %p97, %p98
    %p100 = scmp.ne.s32.totalorder %s89, %s90
    %p101 = scmp.eq.s32.totalorder %s13, 0
    %p102 = por %p100, %p101
    %p103 = scmp.ne.s32.totalorder %s89, %s90
    %p104 = scmp.eq.s32.totalorder %s14, 1
    %p105 = por %p103, %p104
    %p107 = scmp.ne.s32.totalorder %s90, %s106
    %p108 = scmp.eq.s32.totalorder %s14, 0
    %p109 = por %p107, %p108
    %p110 = scmp.le.s32.totalorder 1, %s8
    %p111 = scmp.lt.s32.totalorder %s8, 3
    %p112 = pnand %p110, %p111
    %p113 = pneg %p112
    // Predicated region
    $region9: #{channel_attention.3} parent=5 // pred_check
      _
    $region10: #{channel_attention.3} parent=5 // pred_check_branch
      %115 = sbr.rel (%p112) target = $region12
    $region11: #{channel_attention.3} parent=5 // pred_region
      %s116 = ssub.s32 %s8, 1
    $region12: #{channel_attention.3} parent=5 // pred_fallthru
      _
    %p117 = scmp.lt.s32.totalorder %s8, 2
    // Predicated region
    $region13: #{channel_attention.3} parent=5 // pred_check
      %p118 = pneg %p117
    $region14: #{channel_attention.3} parent=5 // pred_check_branch
      %120 = sbr.rel (%p118) target = $region16
    $region15: #{channel_attention.3} parent=5 // pred_region
      // Predicated region
      $region17: #{channel_attention.3} parent=15 // pred_check
        %p121 = pneg %p42
      $region18: #{channel_attention.3} parent=15 // pred_check_branch
        %123 = sbr.rel (%p121) target = $region20
      $region19: #{channel_attention.3} parent=15 // pred_region
        %s124 = smul.u32 2, %s16
        %p125 = scmp.lt.s32.totalorder %s15, 1
        %s126 = scalar_select %p125, %s15, 1
        %p127 = scmp.lt.s32.totalorder %s124, 1
        %s128 = scalar_select %p127, %s124, 1
        %s129 = smul.addr %s126, 16
        %s130 = sadd.s32 %s128, %s129
        %s131 = smul.addr %s130, 8
        %s132 = scalar_lea.vmem %s0, %s131
        %s133 = smul.u32 2, %s16
      $region20: #{channel_attention.3} parent=15 // pred_fallthru
        _
      // Predicated region
      $region21: #{channel_attention.3} parent=15 // pred_check
        %p134 = pneg %p68
      $region22: #{channel_attention.3} parent=15 // pred_check_branch
        %136 = sbr.rel (%p134) target = $region24
      $region23: #{channel_attention.3} parent=15 // pred_region
        %p137 = scmp.lt.s32.totalorder %s15, 1
        %s138 = scalar_select %p137, %s15, 1
        %s139 = smul.addr %s138, 8
        %s140 = smul.addr %s139, 8
        %s141 = scalar_lea.vmem %s1, %s140
      $region24: #{channel_attention.3} parent=15 // pred_fallthru
        _
    $region16: #{channel_attention.3} parent=5 // pred_fallthru
      _
    %p142 = scmp.le.s32.totalorder 1, %s8
    %p143 = scmp.lt.s32.totalorder %s8, 3
    %p144 = pnand %p142, %p143
    %p145 = pneg %p144
    // Predicated region
    $region25: #{channel_attention.3} parent=5 // pred_check
      _
    $region26: #{channel_attention.3} parent=5 // pred_check_branch
      %147 = sbr.rel (%p144) target = $region28
    $region27: #{channel_attention.3} parent=5 // pred_region
      %s148 = ssub.s32 %s8, 1
      %s149 = smul.u32 2, %s18
      %p150 = scmp.lt.s32.totalorder %s17, 1
      %s151 = scalar_select %p150, %s17, 1
      %p152 = scmp.lt.s32.totalorder %s149, 1
      %s153 = scalar_select %p152, %s149, 1
      %s154 = smul.addr %s151, 16
      %s155 = sadd.s32 %s153, %s154
      %s156 = smul.addr %s155, 8
      %s157 = scalar_lea.vmem %s0, %s156
      %p158 = pneg %p48
      %p159 = pneg %p45
      %p160 = scmp.lt.s32.totalorder %s17, 1
      %s161 = scalar_select %p160, %s17, 1
      %s162 = smul.addr %s161, 8
      %s163 = smul.addr %s162, 8
      %s164 = scalar_lea.vmem %s1, %s163
      %p165 = pneg %p74
      %p166 = pneg %p71
      %p167 = pneg %p102
      %p168 = pneg %p99
      %s169 = smul.u32 2, %s18
      %p170 = scmp.lt.s32.totalorder %s17, 1
      %s171 = scalar_select %p170, %s17, 1
      %p172 = scmp.lt.s32.totalorder %s169, 1
      %s173 = scalar_select %p172, %s169, 1
      %s174 = smul.addr %s171, 16
      %s175 = sadd.s32 %s173, %s174
      %s176 = smul.addr %s175, 8
      %s177 = scalar_lea.vmem %s2, %s176
      %s178 = smul.u32 2, %s18
      %p179 = scmp.lt.s32.totalorder %s17, 1
      %s180 = scalar_select %p179, %s17, 1
      %p181 = scmp.lt.s32.totalorder %s178, 1
      %s182 = scalar_select %p181, %s178, 1
      %s183 = smul.addr %s180, 16
      %s184 = sadd.s32 %s182, %s183
      %s185 = smul.addr %s184, 8
      %s186 = scalar_lea.vmem %s0, %s185
      %s187 = smul.u32 2, %s18
      %p188 = scmp.lt.s32.totalorder %s17, 1
      %s189 = scalar_select %p188, %s17, 1
      %s190 = smul.addr %s189, 8
      %s191 = smul.addr %s190, 8
      %s192 = scalar_lea.vmem %s1, %s191
      %s193 = smul.u32 2, %s18
      %p194 = scmp.lt.s32.totalorder %s17, 1
      %s195 = scalar_select %p194, %s17, 1
      %p196 = scmp.lt.s32.totalorder %s193, 1
      %s197 = scalar_select %p196, %s193, 1
      %s198 = smul.addr %s195, 16
      %s199 = sadd.s32 %s197, %s198
      %s200 = smul.addr %s199, 8
      %s201 = scalar_lea.vmem %s2, %s200
      %s202 = smul.u32 2, %s18
      %v203 = vld [vmem:[%s186] sm:$0xff]
      %v204 = vld [vmem:[%s186 + $0x8] sm:$0xff]
      %v205 = vld [vmem:[%s186 + $0x10] sm:$0xff]
      %v206 = vld [vmem:[%s186 + $0x18] sm:$0xff]
      %v207 = vld [vmem:[%s186 + $0x20] sm:$0xff]
      %v208 = vld [vmem:[%s186 + $0x28] sm:$0xff]
      %v209 = vld [vmem:[%s186 + $0x30] sm:$0xff]
      %v210 = vld [vmem:[%s186 + $0x38] sm:$0xff]
      %v211 = vld [vmem:[%s186 + $0x40] sm:$0xff]
      %v212 = vld [vmem:[%s186 + $0x48] sm:$0xff]
      %v213 = vld [vmem:[%s186 + $0x50] sm:$0xff]
      %v214 = vld [vmem:[%s186 + $0x58] sm:$0xff]
      %v215 = vld [vmem:[%s186 + $0x60] sm:$0xff]
      %v216 = vld [vmem:[%s186 + $0x68] sm:$0xff]
      %v217 = vld [vmem:[%s186 + $0x70] sm:$0xff]
      %v218 = vld [vmem:[%s186 + $0x78] sm:$0xff]
      %v219 = vld [vmem:[%s192] sm:$0xff]
      %v220 = vld [vmem:[%s192 + $0x8] sm:$0xff]
      %v221 = vld [vmem:[%s192 + $0x10] sm:$0xff]
      %v222 = vld [vmem:[%s192 + $0x18] sm:$0xff]
      %v223 = vld [vmem:[%s192 + $0x20] sm:$0xff]
      %v224 = vld [vmem:[%s192 + $0x28] sm:$0xff]
      %v225 = vld [vmem:[%s192 + $0x30] sm:$0xff]
      %v226 = vld [vmem:[%s192 + $0x38] sm:$0xff]
      %228 = vset.pattern.permute.xlu0 0
      %229 = vperm.xlu0 %228, %v219
      %v230 = vpop.permute.xlu0 %229
      %233 = vset.pattern.permute.xlu0 0
      %234 = vperm.xlu0 %233, %v220
      %v235 = vpop.permute.xlu0 %234
      %238 = vset.pattern.permute.xlu0 0
      %239 = vperm.xlu0 %238, %v221
      %v240 = vpop.permute.xlu0 %239
      %243 = vset.pattern.permute.xlu0 0
      %244 = vperm.xlu0 %243, %v222
      %v245 = vpop.permute.xlu0 %244
      %248 = vset.pattern.permute.xlu0 0
      %249 = vperm.xlu0 %248, %v223
      %v250 = vpop.permute.xlu0 %249
      %253 = vset.pattern.permute.xlu0 0
      %254 = vperm.xlu0 %253, %v224
      %v255 = vpop.permute.xlu0 %254
      %258 = vset.pattern.permute.xlu0 0
      %259 = vperm.xlu0 %258, %v225
      %v260 = vpop.permute.xlu0 %259
      %263 = vset.pattern.permute.xlu0 0
      %264 = vperm.xlu0 %263, %v226
      %v265 = vpop.permute.xlu0 %264
      %v267 = vmul.f32 %v203, %v230
      %v268 = vmul.f32 %v204, %v230
      %v269 = vmul.f32 %v205, %v235
      %v270 = vmul.f32 %v206, %v235
      %v271 = vmul.f32 %v207, %v240
      %v272 = vmul.f32 %v208, %v240
      %v273 = vmul.f32 %v209, %v245
      %v274 = vmul.f32 %v210, %v245
      %v275 = vmul.f32 %v211, %v250
      %v276 = vmul.f32 %v212, %v250
      %v277 = vmul.f32 %v213, %v255
      %v278 = vmul.f32 %v214, %v255
      %v279 = vmul.f32 %v215, %v260
      %v280 = vmul.f32 %v216, %v260
      %v281 = vmul.f32 %v217, %v265
      %v282 = vmul.f32 %v218, %v265
      %283 = vst [vmem:[%s201] sm:$0xff] %v267
      %284 = vst [vmem:[%s201 + $0x8] sm:$0xff] %v268
      %285 = vst [vmem:[%s201 + $0x10] sm:$0xff] %v269
      %286 = vst [vmem:[%s201 + $0x18] sm:$0xff] %v270
      %287 = vst [vmem:[%s201 + $0x20] sm:$0xff] %v271
      %288 = vst [vmem:[%s201 + $0x28] sm:$0xff] %v272
      %289 = vst [vmem:[%s201 + $0x30] sm:$0xff] %v273
      %290 = vst [vmem:[%s201 + $0x38] sm:$0xff] %v274
      %291 = vst [vmem:[%s201 + $0x40] sm:$0xff] %v275
      %292 = vst [vmem:[%s201 + $0x48] sm:$0xff] %v276
      %293 = vst [vmem:[%s201 + $0x50] sm:$0xff] %v277
      %294 = vst [vmem:[%s201 + $0x58] sm:$0xff] %v278
      %295 = vst [vmem:[%s201 + $0x60] sm:$0xff] %v279
      %296 = vst [vmem:[%s201 + $0x68] sm:$0xff] %v280
      %297 = vst [vmem:[%s201 + $0x70] sm:$0xff] %v281
      %298 = vst [vmem:[%s201 + $0x78] sm:$0xff] %v282
      %s299 = smul.u32 2, %s18
      %p300 = scmp.lt.s32.totalorder %s17, 1
      %s301 = scalar_select %p300, %s17, 1
      %p302 = scmp.lt.s32.totalorder %s299, 1
      %s303 = scalar_select %p302, %s299, 1
      %s304 = smul.addr %s301, 16
      %s305 = sadd.s32 %s303, %s304
      %s306 = smul.addr %s305, 8
      %s307 = scalar_lea.vmem %s2, %s306
      // Predicated region
      $region29: #{channel_attention.3} parent=27 // pred_check
        %p308 = pneg %p99
      $region30: #{channel_attention.3} parent=27 // pred_check_branch
        %310 = sbr.rel (%p308) target = $region32
      $region31: #{channel_attention.3} parent=27 // pred_region
        %s311 = smul.u32 2, %s18
      $region32: #{channel_attention.3} parent=27 // pred_fallthru
        _
    $region28: #{channel_attention.3} parent=5 // pred_fallthru
      _
    %p312 = scmp.le.s32.totalorder 2, %s8
    // Predicated region
    $region33: #{channel_attention.3} parent=5 // pred_check
      %p313 = pneg %p312
    $region34: #{channel_attention.3} parent=5 // pred_check_branch
      %315 = sbr.rel (%p313) target = $region36
    $region35: #{channel_attention.3} parent=5 // pred_region
      %s316 = ssub.s32 %s8, 2
      // Predicated region
      $region37: #{channel_attention.3} parent=35 // pred_check
        %p317 = pneg %p105
      $region38: #{channel_attention.3} parent=35 // pred_check_branch
        %319 = sbr.rel (%p317) target = $region40
      $region39: #{channel_attention.3} parent=35 // pred_region
        %s320 = smul.u32 2, %s20
        %p321 = scmp.lt.s32.totalorder %s19, 1
        %s322 = scalar_select %p321, %s19, 1
        %p323 = scmp.lt.s32.totalorder %s320, 1
        %s324 = scalar_select %p323, %s320, 1
        %s325 = smul.addr %s322, 16
        %s326 = sadd.s32 %s324, %s325
        %s327 = smul.addr %s326, 8
        %s328 = scalar_lea.vmem %s2, %s327
      $region40: #{channel_attention.3} parent=35 // pred_fallthru
        _
    $region36: #{channel_attention.3} parent=5 // pred_fallthru
      _
  $region6: #{channel_attention.3} parent=0 // loop_footer
    %s12 = sadd.s32 1, %s8
  $region7: #{channel_attention.3} parent=0 // loop_footer_branch
    %7 = sbr.rel target = $region3
  $region8: #{channel_attention.3} parent=0 // loop_exit
    _

// kernel: channel_attention.2
$region0: #{channel_attention.2}
  #allocation0 [shape = 'u32[]', space=smem, size = 0x4, offset = 0x4, fixed_abs, tag = 'smem constant byte address 0x4 - core index']
  #allocation1 [shape = 'u32[144,128]{1,0:T(1,128)}', space=vmem, size = 0x12000, scoped, tag = 'internal scratch']
  #allocation2 [shape = 'f32[64,1]{1,0:T(8,128)}', space=vmem, size = 0x8000, scoped, tag = 'scratch operand']
  #allocation3 [shape = 'f32[64,1]{1,0:T(8,128)}', space=vmem, size = 0x8000, scoped, tag = 'scratch operand']
  %s0 = inlined_call_operand.vmem [shape: f32[2,64,256], index: 0, kind: input, shape index: {}]
  %s1 = inlined_call_operand.vmem [shape: f32[32,64], index: 1, kind: input, shape index: {}]
  %s2 = inlined_call_operand.vmem [shape: f32[64,32], index: 2, kind: input, shape index: {}]
  %s3 = inlined_call_operand.vmem [shape: f32[2,64,1], index: 3, kind: output, shape index: {}]
  %s4 = sld [smem:[#allocation0]]
  $region53: #{channel_attention.2} parent=0
    _
  %s6 = ssub.s32 1, %s4
  %s7 = scalar_select 0, %s6, %s4
  loop: start=0, step=1, limit=4
  $region2: #{channel_attention.2} parent=0 // loop_pre_header
    _
  $region3: #{channel_attention.2} parent=0 // loop_header
    %s9 = sphi 0, %s13
    %p10 = scmp.ge.s32.totalorder %s9, 4
    %s16 = sphi 0, %s28
    %s17 = sphi 0, %s24
    %s18 = sphi 0, %s16
    %s19 = sphi 0, %s17
    %s20 = sphi 0, %s18
    %s21 = sphi 0, %s19
    %s33 = sphi 0, %s35
    %s36 = sphi 0, %s33
    %s37 = sphi 0, %s36
    %s53 = sphi 0, %s37
    %s57 = sphi 0, %s57
    %s59 = sphi 0, %s57
    %s60 = sphi 0, %s59
    %s74 = sphi 0, %s60
    %s78 = sphi 0, %s78
    %s80 = sphi 0, %s78
    %s81 = sphi 0, %s80
    %s95 = sphi 0, %s81
    %s101 = sphi 0, %s103
    %s104 = sphi 0, %s101
    %s105 = sphi 0, %s104
    %s121 = sphi 0, %s105
  $region4: #{channel_attention.2} parent=0 // loop_header_branch
    %12 = sbr.rel (%p10) target = $region8
  $region5: #{channel_attention.2} parent=0 // loop_body
    %s14 = ssub.s32 %s9, 1
    %s15 = ssub.s32 %s9, 2
    %s22 = sadd.s32 1, %s17
    %p23 = scmp.ge.s32.totalorder %s22, 1
    %s24 = scalar_select %p23, 0, %s22
    %s25 = sadd.s32 1, %s16
    %s26 = scalar_select %p23, %s25, %s16
    %p27 = scmp.ge.s32.totalorder %s26, 2
    %s28 = scalar_select %p27, 0, %s26
    %s29 = ssub.s32 %s16, %s28
    %s30 = ssub.s32 %s17, %s24
    %s31 = sor.u32 %s29, %s30
    %p32 = scmp.eq.s32.totalorder %s31, 0
    %s34 = sadd.s32 %s33, 1
    %s35 = scalar_select %p32, %s33, %s34
    %p38 = pneg %p32
    %p39 = scmp.eq.s32.totalorder %s9, 1
    %p40 = por %p38, %p39
    %p41 = scmp.ne.s32.totalorder %s33, %s36
    %p42 = scmp.eq.s32.totalorder %s9, 0
    %p43 = por %p41, %p42
    %p44 = scmp.ne.s32.totalorder %s33, %s36
    %p45 = scmp.eq.s32.totalorder %s14, 1
    %p46 = por %p44, %p45
    %p47 = scmp.ne.s32.totalorder %s36, %s37
    %p48 = scmp.eq.s32.totalorder %s14, 0
    %p49 = por %p47, %p48
    %p50 = scmp.ne.s32.totalorder %s36, %s37
    %p51 = scmp.eq.s32.totalorder %s15, 1
    %p52 = por %p50, %p51
    %p54 = scmp.ne.s32.totalorder %s37, %s53
    %p55 = scmp.eq.s32.totalorder %s15, 0
    %p56 = por %p54, %p55
    %s58 = sadd.s32 %s57, 1
    %p61 = scmp.eq.s32.totalorder %s9, 1
    %p62 = scmp.ne.s32.totalorder %s57, %s59
    %p63 = scmp.eq.s32.totalorder %s9, 0
    %p64 = por %p62, %p63
    %p65 = scmp.ne.s32.totalorder %s57, %s59
    %p66 = scmp.eq.s32.totalorder %s14, 1
    %p67 = por %p65, %p66
    %p68 = scmp.ne.s32.totalorder %s59, %s60
    %p69 = scmp.eq.s32.totalorder %s14, 0
    %p70 = por %p68, %p69
    %p71 = scmp.ne.s32.totalorder %s59, %s60
    %p72 = scmp.eq.s32.totalorder %s15, 1
    %p73 = por %p71, %p72
    %p75 = scmp.ne.s32.totalorder %s60, %s74
    %p76 = scmp.eq.s32.totalorder %s15, 0
    %p77 = por %p75, %p76
    %s79 = sadd.s32 %s78, 1
    %p82 = scmp.eq.s32.totalorder %s9, 1
    %p83 = scmp.ne.s32.totalorder %s78, %s80
    %p84 = scmp.eq.s32.totalorder %s9, 0
    %p85 = por %p83, %p84
    %p86 = scmp.ne.s32.totalorder %s78, %s80
    %p87 = scmp.eq.s32.totalorder %s14, 1
    %p88 = por %p86, %p87
    %p89 = scmp.ne.s32.totalorder %s80, %s81
    %p90 = scmp.eq.s32.totalorder %s14, 0
    %p91 = por %p89, %p90
    %p92 = scmp.ne.s32.totalorder %s80, %s81
    %p93 = scmp.eq.s32.totalorder %s15, 1
    %p94 = por %p92, %p93
    %p96 = scmp.ne.s32.totalorder %s81, %s95
    %p97 = scmp.eq.s32.totalorder %s15, 0
    %p98 = por %p96, %p97
    %s99 = ssub.s32 %s16, %s28
    %p100 = scmp.eq.s32.totalorder %s99, 0
    %s102 = sadd.s32 %s101, 1
    %s103 = scalar_select %p100, %s101, %s102
    %p106 = pneg %p100
    %p107 = scmp.eq.s32.totalorder %s9, 1
    %p108 = por %p106, %p107
    %p109 = scmp.ne.s32.totalorder %s101, %s104
    %p110 = scmp.eq.s32.totalorder %s9, 0
    %p111 = por %p109, %p110
    %p112 = scmp.ne.s32.totalorder %s101, %s104
    %p113 = scmp.eq.s32.totalorder %s14, 1
    %p114 = por %p112, %p113
    %p115 = scmp.ne.s32.totalorder %s104, %s105
    %p116 = scmp.eq.s32.totalorder %s14, 0
    %p117 = por %p115, %p116
    %p118 = scmp.ne.s32.totalorder %s104, %s105
    %p119 = scmp.eq.s32.totalorder %s15, 1
    %p120 = por %p118, %p119
    %p122 = scmp.ne.s32.totalorder %s105, %s121
    %p123 = scmp.eq.s32.totalorder %s15, 0
    %p124 = por %p122, %p123
    %p125 = scmp.le.s32.totalorder 1, %s9
    %p126 = scmp.lt.s32.totalorder %s9, 3
    %p127 = pnand %p125, %p126
    %p128 = pneg %p127
    // Predicated region
    $region9: #{channel_attention.2} parent=5 // pred_check
      _
    $region10: #{channel_attention.2} parent=5 // pred_check_branch
      %130 = sbr.rel (%p127) target = $region12
    $region11: #{channel_attention.2} parent=5 // pred_region
      %s131 = ssub.s32 %s9, 1
      // Predicated region
      $region13: #{channel_attention.2} parent=11 // pred_check
        %p132 = pneg %p70
      $region14: #{channel_attention.2} parent=11 // pred_check_branch
        %134 = sbr.rel (%p132) target = $region16
      $region15: #{channel_attention.2} parent=11 // pred_region
        _
      $region16: #{channel_attention.2} parent=11 // pred_fallthru
        _
      // Predicated region
      $region17: #{channel_attention.2} parent=11 // pred_check
        %p135 = pneg %p91
      $region18: #{channel_attention.2} parent=11 // pred_check_branch
        %137 = sbr.rel (%p135) target = $region20
      $region19: #{channel_attention.2} parent=11 // pred_region
        _
      $region20: #{channel_attention.2} parent=11 // pred_fallthru
        _
    $region12: #{channel_attention.2} parent=5 // pred_fallthru
      _
    %p138 = scmp.lt.s32.totalorder %s9, 2
    // Predicated region
    $region21: #{channel_attention.2} parent=5 // pred_check
      %p139 = pneg %p138
    $region22: #{channel_attention.2} parent=5 // pred_check_branch
      %141 = sbr.rel (%p139) target = $region24
    $region23: #{channel_attention.2} parent=5 // pred_region
      // Predicated region
      $region25: #{channel_attention.2} parent=23 // pred_check
        %p142 = pneg %p43
      $region26: #{channel_attention.2} parent=23 // pred_check_branch
        %144 = sbr.rel (%p142) target = $region28
      $region27: #{channel_attention.2} parent=23 // pred_region
        %s145 = smul.u32 2, %s17
        %p146 = scmp.lt.s32.totalorder %s16, 1
        %s147 = scalar_select %p146, %s16, 1
        %p148 = scmp.lt.s32.totalorder %s145, 1
        %s149 = scalar_select %p148, %s145, 1
        %s150 = smul.addr %s147, 16
        %s151 = sadd.s32 %s149, %s150
        %s152 = smul.addr %s151, 8
        %s153 = scalar_lea.vmem %s0, %s152
        %s154 = smul.u32 2, %s17
      $region28: #{channel_attention.2} parent=23 // pred_fallthru
        _
    $region24: #{channel_attention.2} parent=5 // pred_fallthru
      _
    %p155 = scmp.le.s32.totalorder 1, %s9
    %p156 = scmp.lt.s32.totalorder %s9, 3
    %p157 = pnand %p155, %p156
    %p158 = pneg %p157
    // Predicated region
    $region29: #{channel_attention.2} parent=5 // pred_check
      _
    $region30: #{channel_attention.2} parent=5 // pred_check_branch
      %160 = sbr.rel (%p157) target = $region32
    $region31: #{channel_attention.2} parent=5 // pred_region
      %s161 = ssub.s32 %s9, 1
      %s162 = smul.u32 2, %s19
      %p163 = scmp.lt.s32.totalorder %s18, 1
      %s164 = scalar_select %p163, %s18, 1
      %p165 = scmp.lt.s32.totalorder %s162, 1
      %s166 = scalar_select %p165, %s162, 1
      %s167 = smul.addr %s164, 16
      %s168 = sadd.s32 %s166, %s167
      %s169 = smul.addr %s168, 8
      %s170 = scalar_lea.vmem %s0, %s169
      %p171 = pneg %p49
      %p172 = pneg %p46
      %p173 = pneg %p70
      %p174 = pneg %p67
      %p175 = pneg %p91
      %p176 = pneg %p88
      %p177 = pneg %p117
      %p178 = pneg %p114
      %p179 = scmp.lt.s32.totalorder %s18, 1
      %s180 = scalar_select %p179, %s18, 1
      %s181 = smul.addr %s180, 8
      %s182 = smul.addr %s181, 8
      %s183 = scalar_lea.vmem %s3, %s182
      %s184 = smul.u32 2, %s19
      %p185 = scmp.lt.s32.totalorder %s18, 1
      %s186 = scalar_select %p185, %s18, 1
      %p187 = scmp.lt.s32.totalorder %s184, 1
      %s188 = scalar_select %p187, %s184, 1
      %s189 = smul.addr %s186, 16
      %s190 = sadd.s32 %s188, %s189
      %s191 = smul.addr %s190, 8
      %s192 = scalar_lea.vmem %s0, %s191
      %s193 = smul.u32 2, %s19
      %p194 = scmp.lt.s32.totalorder %s18, 1
      %s195 = scalar_select %p194, %s18, 1
      %s196 = smul.addr %s195, 8
      %s197 = smul.addr %s196, 8
      %s198 = scalar_lea.vmem %s3, %s197
      %p199 = scmp.eq.s32.totalorder %s19, 0
      // Predicated region
      $region33: #{channel_attention.2} parent=31 // pred_check
        %p200 = pneg %p199
      $region34: #{channel_attention.2} parent=31 // pred_check_branch
        %202 = sbr.rel (%p200) target = $region36
      $region35: #{channel_attention.2} parent=31 // pred_region
        %vm203 = vcmask 7168
        %204 = vst.msk [vmem:[#allocation2] sm:$0xff] %vm203, 0.0
        %205 = vst.msk [vmem:[#allocation2 + $0x8] sm:$0xff] %vm203, 0.0
        %206 = vst.msk [vmem:[#allocation2 + $0x10] sm:$0xff] %vm203, 0.0
        %207 = vst.msk [vmem:[#allocation2 + $0x18] sm:$0xff] %vm203, 0.0
        %208 = vst.msk [vmem:[#allocation2 + $0x20] sm:$0xff] %vm203, 0.0
        %209 = vst.msk [vmem:[#allocation2 + $0x28] sm:$0xff] %vm203, 0.0
        %210 = vst.msk [vmem:[#allocation2 + $0x30] sm:$0xff] %vm203, 0.0
        %211 = vst.msk [vmem:[#allocation2 + $0x38] sm:$0xff] %vm203, 0.0
        %212 = vst.msk [vmem:[#allocation3] sm:$0xff] %vm203, -inf
        %213 = vst.msk [vmem:[#allocation3 + $0x8] sm:$0xff] %vm203, -inf
        %214 = vst.msk [vmem:[#allocation3 + $0x10] sm:$0xff] %vm203, -inf
        %215 = vst.msk [vmem:[#allocation3 + $0x18] sm:$0xff] %vm203, -inf
        %216 = vst.msk [vmem:[#allocation3 + $0x20] sm:$0xff] %vm203, -inf
        %217 = vst.msk [vmem:[#allocation3 + $0x28] sm:$0xff] %vm203, -inf
        %218 = vst.msk [vmem:[#allocation3 + $0x30] sm:$0xff] %vm203, -inf
        %219 = vst.msk [vmem:[#allocation3 + $0x38] sm:$0xff] %vm203, -inf
      $region36: #{channel_attention.2} parent=31 // pred_fallthru
        _
      %v220 = vld [vmem:[%s192] sm:$0xff]
      %v221 = vld [vmem:[%s192 + $0x8] sm:$0xff]
      %v222 = vld [vmem:[%s192 + $0x10] sm:$0xff]
      %v223 = vld [vmem:[%s192 + $0x18] sm:$0xff]
      %v224 = vld [vmem:[%s192 + $0x20] sm:$0xff]
      %v225 = vld [vmem:[%s192 + $0x28] sm:$0xff]
      %v226 = vld [vmem:[%s192 + $0x30] sm:$0xff]
      %v227 = vld [vmem:[%s192 + $0x38] sm:$0xff]
      %v228 = vld [vmem:[%s192 + $0x40] sm:$0xff]
      %v229 = vld [vmem:[%s192 + $0x48] sm:$0xff]
      %v230 = vld [vmem:[%s192 + $0x50] sm:$0xff]
      %v231 = vld [vmem:[%s192 + $0x58] sm:$0xff]
      %v232 = vld [vmem:[%s192 + $0x60] sm:$0xff]
      %v233 = vld [vmem:[%s192 + $0x68] sm:$0xff]
      %v234 = vld [vmem:[%s192 + $0x70] sm:$0xff]
      %v235 = vld [vmem:[%s192 + $0x78] sm:$0xff]
      %v236 = vld [vmem:[#allocation2] sm:$0xff]
      %v237 = vld [vmem:[#allocation2 + $0x8] sm:$0xff]
      %v238 = vld [vmem:[#allocation2 + $0x10] sm:$0xff]
      %v239 = vld [vmem:[#allocation2 + $0x18] sm:$0xff]
      %v240 = vld [vmem:[#allocation2 + $0x20] sm:$0xff]
      %v241 = vld [vmem:[#allocation2 + $0x28] sm:$0xff]
      %v242 = vld [vmem:[#allocation2 + $0x30] sm:$0xff]
      %v243 = vld [vmem:[#allocation2 + $0x38] sm:$0xff]
      %v244 = vadd.f32 %v220, %v221
      %245 = vadd.xlane.f32.xlu0 %v244
      %v246 = vpop.xlane.xlu0 %245
      %v247 = vadd.f32 %v222, %v223
      %248 = vadd.xlane.f32.xlu0 %v247
      %v249 = vpop.xlane.xlu0 %248
      %v250 = vadd.f32 %v224, %v225
      %251 = vadd.xlane.f32.xlu0 %v250
      %v252 = vpop.xlane.xlu0 %251
      %v253 = vadd.f32 %v226, %v227
      %254 = vadd.xlane.f32.xlu0 %v253
      %v255 = vpop.xlane.xlu0 %254
      %v256 = vadd.f32 %v228, %v229
      %257 = vadd.xlane.f32.xlu0 %v256
      %v258 = vpop.xlane.xlu0 %257
      %v259 = vadd.f32 %v230, %v231
      %260 = vadd.xlane.f32.xlu0 %v259
      %v261 = vpop.xlane.xlu0 %260
      %v262 = vadd.f32 %v232, %v233
      %263 = vadd.xlane.f32.xlu0 %v262
      %v264 = vpop.xlane.xlu0 %263
      %v265 = vadd.f32 %v234, %v235
      %266 = vadd.xlane.f32.xlu0 %v265
      %v267 = vpop.xlane.xlu0 %266
      %v268 = vadd.f32 %v236, %v246
      %v269 = vadd.f32 %v237, %v249
      %v270 = vadd.f32 %v238, %v252
      %v271 = vadd.f32 %v239, %v255
      %v272 = vadd.f32 %v240, %v258
      %v273 = vadd.f32 %v241, %v261
      %v274 = vadd.f32 %v242, %v264
      %v275 = vadd.f32 %v243, %v267
      %vm276 = vcmask 7168
      %277 = vst.msk [vmem:[#allocation2] sm:$0xff] %vm276, %v268
      %278 = vst.msk [vmem:[#allocation2 + $0x8] sm:$0xff] %vm276, %v269
      %279 = vst.msk [vmem:[#allocation2 + $0x10] sm:$0xff] %vm276, %v270
      %280 = vst.msk [vmem:[#allocation2 + $0x18] sm:$0xff] %vm276, %v271
      %281 = vst.msk [vmem:[#allocation2 + $0x20] sm:$0xff] %vm276, %v272
      %282 = vst.msk [vmem:[#allocation2 + $0x28] sm:$0xff] %vm276, %v273
      %283 = vst.msk [vmem:[#allocation2 + $0x30] sm:$0xff] %vm276, %v274
      %284 = vst.msk [vmem:[#allocation2 + $0x38] sm:$0xff] %vm276, %v275
      %v285 = vld [vmem:[#allocation3] sm:$0xff]
      %v286 = vld [vmem:[#allocation3 + $0x8] sm:$0xff]
      %v287 = vld [vmem:[#allocation3 + $0x10] sm:$0xff]
      %v288 = vld [vmem:[#allocation3 + $0x18] sm:$0xff]
      %v289 = vld [vmem:[#allocation3 + $0x20] sm:$0xff]
      %v290 = vld [vmem:[#allocation3 + $0x28] sm:$0xff]
      %v291 = vld [vmem:[#allocation3 + $0x30] sm:$0xff]
      %v292 = vld [vmem:[#allocation3 + $0x38] sm:$0xff]
      %v293 = vmax.f32 %v220, %v221
      %294 = vmax.xlane.f32.xlu0 %v293
      %v295 = vpop.xlane.xlu0 %294
      %v296 = vmax.f32 %v222, %v223
      %297 = vmax.xlane.f32.xlu0 %v296
      %v298 = vpop.xlane.xlu0 %297
      %v299 = vmax.f32 %v224, %v225
      %300 = vmax.xlane.f32.xlu0 %v299
      %v301 = vpop.xlane.xlu0 %300
      %v302 = vmax.f32 %v226, %v227
      %303 = vmax.xlane.f32.xlu0 %v302
      %v304 = vpop.xlane.xlu0 %303
      %v305 = vmax.f32 %v228, %v229
      %306 = vmax.xlane.f32.xlu0 %v305
      %v307 = vpop.xlane.xlu0 %306
      %v308 = vmax.f32 %v230, %v231
      %309 = vmax.xlane.f32.xlu0 %v308
      %v310 = vpop.xlane.xlu0 %309
      %v311 = vmax.f32 %v232, %v233
      %312 = vmax.xlane.f32.xlu0 %v311
      %v313 = vpop.xlane.xlu0 %312
      %v314 = vmax.f32 %v234, %v235
      %315 = vmax.xlane.f32.xlu0 %v314
      %v316 = vpop.xlane.xlu0 %315
      %v317 = vmax.f32 %v285, %v295
      %v318 = vmax.f32 %v286, %v298
      %v319 = vmax.f32 %v287, %v301
      %v320 = vmax.f32 %v288, %v304
      %v321 = vmax.f32 %v289, %v307
      %v322 = vmax.f32 %v290, %v310
      %v323 = vmax.f32 %v291, %v313
      %v324 = vmax.f32 %v292, %v316
      %325 = vst.msk [vmem:[#allocation3] sm:$0xff] %vm276, %v317
      %326 = vst.msk [vmem:[#allocation3 + $0x8] sm:$0xff] %vm276, %v318
      %327 = vst.msk [vmem:[#allocation3 + $0x10] sm:$0xff] %vm276, %v319
      %328 = vst.msk [vmem:[#allocation3 + $0x18] sm:$0xff] %vm276, %v320
      %329 = vst.msk [vmem:[#allocation3 + $0x20] sm:$0xff] %vm276, %v321
      %330 = vst.msk [vmem:[#allocation3 + $0x28] sm:$0xff] %vm276, %v322
      %331 = vst.msk [vmem:[#allocation3 + $0x30] sm:$0xff] %vm276, %v323
      %332 = vst.msk [vmem:[#allocation3 + $0x38] sm:$0xff] %vm276, %v324
      // Predicated region
      $region37: #{channel_attention.2} parent=31 // pred_check
        %p333 = pneg %p199
      $region38: #{channel_attention.2} parent=31 // pred_check_branch
        %335 = sbr.rel (%p333) target = $region40
      $region39: #{channel_attention.2} parent=31 // pred_region
        %v336 = vld [vmem:[%s1] sm:$0xff]
        %v337 = vld [vmem:[%s1 + $0x8] sm:$0xff]
        %v338 = vld [vmem:[%s1 + $0x10] sm:$0xff]
        %v339 = vld [vmem:[%s1 + $0x18] sm:$0xff]
        %v340 = vld [vmem:[%s2] sm:$0xff]
        %v341 = vld [vmem:[%s2 + $0x8] sm:$0xff]
        %v342 = vld [vmem:[%s2 + $0x10] sm:$0xff]
        %v343 = vld [vmem:[%s2 + $0x18] sm:$0xff]
        %v344 = vld [vmem:[%s2 + $0x20] sm:$0xff]
        %v345 = vld [vmem:[%s2 + $0x28] sm:$0xff]
        %v346 = vld [vmem:[%s2 + $0x30] sm:$0xff]
        %v347 = vld [vmem:[%s2 + $0x38] sm:$0xff]
        %v348 = vld [vmem:[#allocation2] sm:$0xff]
        %v349 = vld [vmem:[#allocation2 + $0x8] sm:$0xff]
        %v350 = vld [vmem:[#allocation2 + $0x10] sm:$0xff]
        %v351 = vld [vmem:[#allocation2 + $0x18] sm:$0xff]
        %v352 = vld [vmem:[#allocation2 + $0x20] sm:$0xff]
        %v353 = vld [vmem:[#allocation2 + $0x28] sm:$0xff]
        %v354 = vld [vmem:[#allocation2 + $0x30] sm:$0xff]
        %v355 = vld [vmem:[#allocation2 + $0x38] sm:$0xff]
        %v356 = vmul.f32 %v348, 0.00390625
        %v357 = vmul.f32 %v349, 0.00390625
        %v358 = vmul.f32 %v350, 0.00390625
        %v359 = vmul.f32 %v351, 0.00390625
        %v360 = vmul.f32 %v352, 0.00390625
        %v361 = vmul.f32 %v353, 0.00390625
        %v362 = vmul.f32 %v354, 0.00390625
        %v363 = vmul.f32 %v355, 0.00390625
        %v364 = vld [vmem:[#allocation3] sm:$0xff]
        %v365 = vld [vmem:[#allocation3 + $0x8] sm:$0xff]
        %v366 = vld [vmem:[#allocation3 + $0x10] sm:$0xff]
        %v367 = vld [vmem:[#allocation3 + $0x18] sm:$0xff]
        %v368 = vld [vmem:[#allocation3 + $0x20] sm:$0xff]
        %v369 = vld [vmem:[#allocation3 + $0x28] sm:$0xff]
        %v370 = vld [vmem:[#allocation3 + $0x30] sm:$0xff]
        %v371 = vld [vmem:[#allocation3 + $0x38] sm:$0xff]
        %vm372 = vcmask 523264
        %v374 = vsel %vm372, %v336, 0
        %v377 = vsel %vm372, %v337, 0
        %v380 = vsel %vm372, %v338, 0
        %v383 = vsel %vm372, %v339, 0
        %385 = vmatprep.subr.mxu0 0.0
        %386 = vmatpush1.msra.mxu0 %v356
        %387 = vmatprep.subr.mxu0 0.0
        %388 = vmatpush1.msra.mxu0 %v357
        %389 = vmatprep.subr.mxu0 0.0
        %390 = vmatpush1.msra.mxu0 %v358
        %391 = vmatprep.subr.mxu0 0.0
        %392 = vmatpush1.msra.mxu0 %v359
        %393 = vmatprep.subr.mxu0 0.0
        %394 = vmatpush1.msra.mxu0 %v360
        %395 = vmatprep.subr.mxu0 0.0
        %396 = vmatpush1.msra.mxu0 %v361
        %397 = vmatprep.subr.mxu0 0.0
        %398 = vmatpush1.msra.mxu0 %v362
        %399 = vmatprep.subr.mxu0 0.0
        %400 = vmatpush1.msra.mxu0 %v363
        %401 = vmatprep.subr.mxu0 0.0
        %402 = vmatpush1.msra.mxu0 0.0
        %403 = vmatprep.subr.mxu0 0.0
        %404 = vmatpush1.msra.mxu0 0.0
        %405 = vmatprep.subr.mxu0 0.0
        %406 = vmatpush1.msra.mxu0 0.0
        %407 = vmatprep.subr.mxu0 0.0
        %408 = vmatpush1.msra.mxu0 0.0
        %409 = vmatprep.subr.mxu0 0.0
        %410 = vmatpush1.msra.mxu0 0.0
        %411 = vmatprep.subr.mxu0 0.0
        %412 = vmatpush1.msra.mxu0 0.0
        %413 = vmatprep.subr.mxu0 0.0
        %414 = vmatpush1.msra.mxu0 0.0
        %415 = vmatprep.subr.mxu0 0.0
        %416 = vmatpush1.msra.mxu0 0.0
        %417 = vmatprep.subr.mxu0 0.0
        %418 = vmatpush1.msra.mxu0 0.0
        %419 = vmatprep.subr.mxu0 0.0
        %420 = vmatpush1.msra.mxu0 0.0
        %421 = vmatprep.subr.mxu0 0.0
        %422 = vmatpush1.msra.mxu0 0.0
        %423 = vmatprep.subr.mxu0 0.0
        %424 = vmatpush1.msra.mxu0 0.0
        %425 = vmatprep.subr.mxu0 0.0
        %426 = vmatpush1.msra.mxu0 0.0
        %427 = vmatprep.subr.mxu0 0.0
        %428 = vmatpush1.msra.mxu0 0.0
        %429 = vmatprep.subr.mxu0 0.0
        %430 = vmatpush1.msra.mxu0 0.0
        %431 = vmatprep.subr.mxu0 0.0
        %432 = vmatpush1.msra.mxu0 0.0
        %433 = vmatprep.subr.mxu0 0.0
        %434 = vmatpush1.msra.mxu0 0.0
        %435 = vmatprep.subr.mxu0 0.0
        %436 = vmatpush1.msra.mxu0 0.0
        %437 = vmatprep.subr.mxu0 0.0
        %438 = vmatpush1.msra.mxu0 0.0
        %439 = vmatprep.subr.mxu0 0.0
        %440 = vmatpush1.msra.mxu0 0.0
        %441 = vmatprep.subr.mxu0 0.0
        %442 = vmatpush1.msra.mxu0 0.0
        %443 = vmatprep.subr.mxu0 0.0
        %444 = vmatpush1.msra.mxu0 0.0
        %445 = vmatprep.subr.mxu0 0.0
        %446 = vmatpush1.msra.mxu0 0.0
        %447 = vmatprep.subr.mxu0 0.0
        %448 = vmatpush1.msra.mxu0 0.0
        %449 = vmatprep.mubr.f32.mxu0 0.0
        %450 = vmatmul.mubr.f32.gmra.mrb[0].mxu0 %v374
        %v451 = vpop.f32.mrb[0].mxu0
        %v452 = vadd.f32 0.0, %v451
        %v453 = vpop.f32.mrb[0].mxu0
        %454 = vmatprep.mubr.f32.mxu0 0.0
        %455 = vmatmul.mubr.f32.gmra.mrb[0].mxu0 %v377
        %v456 = vpop.f32.mrb[0].mxu0
        %v457 = vadd.f32 0.0, %v456
        %v458 = vpop.f32.mrb[0].mxu0
        %459 = vmatprep.mubr.f32.mxu0 0.0
        %460 = vmatmul.mubr.f32.gmra.mrb[0].mxu0 %v380
        %v461 = vpop.f32.mrb[0].mxu0
        %v462 = vadd.f32 0.0, %v461
        %v463 = vpop.f32.mrb[0].mxu0
        %464 = vmatprep.mubr.f32.mxu0 0.0
        %465 = vmatmul.mubr.f32.gmra.mrb[0].mxu0 %v383
        %v466 = vpop.f32.mrb[0].mxu0
        %v467 = vadd.f32 0.0, %v466
        %v468 = vpop.f32.mrb[0].mxu0
        %469 = vdwg.mxu0
        %v470 = vmax.f32 %v452, 0.0
        %v471 = vmax.f32 %v457, 0.0
        %v472 = vmax.f32 %v462, 0.0
        %v473 = vmax.f32 %v467, 0.0
        %474 = vmatprep.subr.mxu0 0.0
        %475 = vmatpush1.msra.mxu0 %v364
        %476 = vmatprep.subr.mxu0 0.0
        %477 = vmatpush1.msra.mxu0 %v365
        %478 = vmatprep.subr.mxu0 0.0
        %479 = vmatpush1.msra.mxu0 %v366
        %480 = vmatprep.subr.mxu0 0.0
        %481 = vmatpush1.msra.mxu0 %v367
        %482 = vmatprep.subr.mxu0 0.0
        %483 = vmatpush1.msra.mxu0 %v368
        %484 = vmatprep.subr.mxu0 0.0
        %485 = vmatpush1.msra.mxu0 %v369
        %486 = vmatprep.subr.mxu0 0.0
        %487 = vmatpush1.msra.mxu0 %v370
        %488 = vmatprep.subr.mxu0 0.0
        %489 = vmatpush1.msra.mxu0 %v371
        %490 = vmatprep.subr.mxu0 0.0
        %491 = vmatpush1.msra.mxu0 0.0
        %492 = vmatprep.subr.mxu0 0.0
        %493 = vmatpush1.msra.mxu0 0.0
        %494 = vmatprep.subr.mxu0 0.0
        %495 = vmatpush1.msra.mxu0 0.0
        %496 = vmatprep.subr.mxu0 0.0
        %497 = vmatpush1.msra.mxu0 0.0
        %498 = vmatprep.subr.mxu0 0.0
        %499 = vmatpush1.msra.mxu0 0.0
        %500 = vmatprep.subr.mxu0 0.0
        %501 = vmatpush1.msra.mxu0 0.0
        %502 = vmatprep.subr.mxu0 0.0
        %503 = vmatpush1.msra.mxu0 0.0
        %504 = vmatprep.subr.mxu0 0.0
        %505 = vmatpush1.msra.mxu0 0.0
        %506 = vmatprep.subr.mxu0 0.0
        %507 = vmatpush1.msra.mxu0 0.0
        %508 = vmatprep.subr.mxu0 0.0
        %509 = vmatpush1.msra.mxu0 0.0
        %510 = vmatprep.subr.mxu0 0.0
        %511 = vmatpush1.msra.mxu0 0.0
        %512 = vmatprep.subr.mxu0 0.0
        %513 = vmatpush1.msra.mxu0 0.0
        %514 = vmatprep.subr.mxu0 0.0
        %515 = vmatpush1.msra.mxu0 0.0
        %516 = vmatprep.subr.mxu0 0.0
        %517 = vmatpush1.msra.mxu0 0.0
        %518 = vmatprep.subr.mxu0 0.0
        %519 = vmatpush1.msra.mxu0 0.0
        %520 = vmatprep.subr.mxu0 0.0
        %521 = vmatpush1.msra.mxu0 0.0
        %522 = vmatprep.subr.mxu0 0.0
        %523 = vmatpush1.msra.mxu0 0.0
        %524 = vmatprep.subr.mxu0 0.0
        %525 = vmatpush1.msra.mxu0 0.0
        %526 = vmatprep.subr.mxu0 0.0
        %527 = vmatpush1.msra.mxu0 0.0
        %528 = vmatprep.subr.mxu0 0.0
        %529 = vmatpush1.msra.mxu0 0.0
        %530 = vmatprep.subr.mxu0 0.0
        %531 = vmatpush1.msra.mxu0 0.0
        %532 = vmatprep.subr.mxu0 0.0
        %533 = vmatpush1.msra.mxu0 0.0
        %534 = vmatprep.subr.mxu0 0.0
        %535 = vmatpush1.msra.mxu0 0.0
        %536 = vmatprep.subr.mxu0 0.0
        %537 = vmatpush1.msra.mxu0 0.0
        %538 = vmatprep.mubr.f32.mxu0 0.0
        %539 = vmatmul.mubr.f32.gmra.mrb[0].mxu0 %v374
        %v540 = vpop.f32.mrb[0].mxu0
        %v541 = vadd.f32 0.0, %v540
        %v542 = vpop.f32.mrb[0].mxu0
        %543 = vmatprep.mubr.f32.mxu0 0.0
        %544 = vmatmul.mubr.f32.gmra.mrb[0].mxu0 %v377
        %v545 = vpop.f32.mrb[0].mxu0
        %v546 = vadd.f32 0.0, %v545
        %v547 = vpop.f32.mrb[0].mxu0
        %548 = vmatprep.mubr.f32.mxu0 0.0
        %549 = vmatmul.mubr.f32.gmra.mrb[0].mxu0 %v380
        %v550 = vpop.f32.mrb[0].mxu0
        %v551 = vadd.f32 0.0, %v550
        %v552 = vpop.f32.mrb[0].mxu0
        %553 = vmatprep.mubr.f32.mxu0 0.0
        %554 = vmatmul.mubr.f32.gmra.mrb[0].mxu0 %v383
        %v555 = vpop.f32.mrb[0].mxu0
        %v556 = vadd.f32 0.0, %v555
        %v557 = vpop.f32.mrb[0].mxu0
        %558 = vdwg.mxu0
        %v559 = vmax.f32 %v541, 0.0
        %v560 = vmax.f32 %v546, 0.0
        %v561 = vmax.f32 %v551, 0.0
        %v562 = vmax.f32 %v556, 0.0
        %vm563 = vcmask 261120
        %v565 = vsel %vm563, %v340, 0
        %v568 = vsel %vm563, %v341, 0
        %v571 = vsel %vm563, %v342, 0
        %v574 = vsel %vm563, %v343, 0
        %v577 = vsel %vm563, %v344, 0
        %v580 = vsel %vm563, %v345, 0
        %v583 = vsel %vm563, %v346, 0
        %v586 = vsel %vm563, %v347, 0
        %588 = vmatprep.subr.mxu0 0.0
        %589 = vmatpush1.msra.mxu0 %v559
        %590 = vmatprep.subr.mxu0 0.0
        %591 = vmatpush1.msra.mxu0 %v560
        %592 = vmatprep.subr.mxu0 0.0
        %593 = vmatpush1.msra.mxu0 %v561
        %594 = vmatprep.subr.mxu0 0.0
        %595 = vmatpush1.msra.mxu0 %v562
        %596 = vmatprep.subr.mxu0 0.0
        %597 = vmatpush1.msra.mxu0 0.0
        %598 = vmatprep.subr.mxu0 0.0
        %599 = vmatpush1.msra.mxu0 0.0
        %600 = vmatprep.subr.mxu0 0.0
        %601 = vmatpush1.msra.mxu0 0.0
        %602 = vmatprep.subr.mxu0 0.0
        %603 = vmatpush1.msra.mxu0 0.0
        %604 = vmatprep.subr.mxu0 0.0
        %605 = vmatpush1.msra.mxu0 0.0
        %606 = vmatprep.subr.mxu0 0.0
        %607 = vmatpush1.msra.mxu0 0.0
        %608 = vmatprep.subr.mxu0 0.0
        %609 = vmatpush1.msra.mxu0 0.0
        %610 = vmatprep.subr.mxu0 0.0
        %611 = vmatpush1.msra.mxu0 0.0
        %612 = vmatprep.subr.mxu0 0.0
        %613 = vmatpush1.msra.mxu0 0.0
        %614 = vmatprep.subr.mxu0 0.0
        %615 = vmatpush1.msra.mxu0 0.0
        %616 = vmatprep.subr.mxu0 0.0
        %617 = vmatpush1.msra.mxu0 0.0
        %618 = vmatprep.subr.mxu0 0.0
        %619 = vmatpush1.msra.mxu0 0.0
        %620 = vmatprep.subr.mxu0 0.0
        %621 = vmatpush1.msra.mxu0 0.0
        %622 = vmatprep.subr.mxu0 0.0
        %623 = vmatpush1.msra.mxu0 0.0
        %624 = vmatprep.subr.mxu0 0.0
        %625 = vmatpush1.msra.mxu0 0.0
        %626 = vmatprep.subr.mxu0 0.0
        %627 = vmatpush1.msra.mxu0 0.0
        %628 = vmatprep.subr.mxu0 0.0
        %629 = vmatpush1.msra.mxu0 0.0
        %630 = vmatprep.subr.mxu0 0.0
        %631 = vmatpush1.msra.mxu0 0.0
        %632 = vmatprep.subr.mxu0 0.0
        %633 = vmatpush1.msra.mxu0 0.0
        %634 = vmatprep.subr.mxu0 0.0
        %635 = vmatpush1.msra.mxu0 0.0
        %636 = vmatprep.subr.mxu0 0.0
        %637 = vmatpush1.msra.mxu0 0.0
        %638 = vmatprep.subr.mxu0 0.0
        %639 = vmatpush1.msra.mxu0 0.0
        %640 = vmatprep.subr.mxu0 0.0
        %641 = vmatpush1.msra.mxu0 0.0
        %642 = vmatprep.subr.mxu0 0.0
        %643 = vmatpush1.msra.mxu0 0.0
        %644 = vmatprep.subr.mxu0 0.0
        %645 = vmatpush1.msra.mxu0 0.0
        %646 = vmatprep.subr.mxu0 0.0
        %647 = vmatpush1.msra.mxu0 0.0
        %648 = vmatprep.subr.mxu0 0.0
        %649 = vmatpush1.msra.mxu0 0.0
        %650 = vmatprep.subr.mxu0 0.0
        %651 = vmatpush1.msra.mxu0 0.0
        %652 = vmatprep.mubr.f32.mxu0 0.0
        %653 = vmatmul.mubr.f32.gmra.mrb[0].mxu0 %v565
        %v654 = vpop.f32.mrb[0].mxu0
        %v655 = vadd.f32 0.0, %v654
        %v656 = vpop.f32.mrb[0].mxu0
        %657 = vmatprep.mubr.f32.mxu0 0.0
        %658 = vmatmul.mubr.f32.gmra.mrb[0].mxu0 %v568
        %v659 = vpop.f32.mrb[0].mxu0
        %v660 = vadd.f32 0.0, %v659
        %v661 = vpop.f32.mrb[0].mxu0
        %662 = vmatprep.mubr.f32.mxu0 0.0
        %663 = vmatmul.mubr.f32.gmra.mrb[0].mxu0 %v571
        %v664 = vpop.f32.mrb[0].mxu0
        %v665 = vadd.f32 0.0, %v664
        %v666 = vpop.f32.mrb[0].mxu0
        %667 = vmatprep.mubr.f32.mxu0 0.0
        %668 = vmatmul.mubr.f32.gmra.mrb[0].mxu0 %v574
        %v669 = vpop.f32.mrb[0].mxu0
        %v670 = vadd.f32 0.0, %v669
        %v671 = vpop.f32.mrb[0].mxu0
        %672 = vmatprep.mubr.f32.mxu0 0.0
        %673 = vmatmul.mubr.f32.gmra.mrb[0].mxu0 %v577
        %v674 = vpop.f32.mrb[0].mxu0
        %v675 = vadd.f32 0.0, %v674
        %v676 = vpop.f32.mrb[0].mxu0
        %677 = vmatprep.mubr.f32.mxu0 0.0
        %678 = vmatmul.mubr.f32.gmra.mrb[0].mxu0 %v580
        %v679 = vpop.f32.mrb[0].mxu0
        %v680 = vadd.f32 0.0, %v679
        %v681 = vpop.f32.mrb[0].mxu0
        %682 = vmatprep.mubr.f32.mxu0 0.0
        %683 = vmatmul.mubr.f32.gmra.mrb[0].mxu0 %v583
        %v684 = vpop.f32.mrb[0].mxu0
        %v685 = vadd.f32 0.0, %v684
        %v686 = vpop.f32.mrb[0].mxu0
        %687 = vmatprep.mubr.f32.mxu0 0.0
        %688 = vmatmul.mubr.f32.gmra.mrb[0].mxu0 %v586
        %v689 = vpop.f32.mrb[0].mxu0
        %v690 = vadd.f32 0.0, %v689
        %v691 = vpop.f32.mrb[0].mxu0
        %692 = vdwg.mxu0
        %693 = vmatprep.subr.mxu0 0.0
        %694 = vmatpush1.msra.mxu0 %v470
        %695 = vmatprep.subr.mxu0 0.0
        %696 = vmatpush1.msra.mxu0 %v471
        %697 = vmatprep.subr.mxu0 0.0
        %698 = vmatpush1.msra.mxu0 %v472
        %699 = vmatprep.subr.mxu0 0.0
        %700 = vmatpush1.msra.mxu0 %v473
        %701 = vmatprep.subr.mxu0 0.0
        %702 = vmatpush1.msra.mxu0 0.0
        %703 = vmatprep.subr.mxu0 0.0
        %704 = vmatpush1.msra.mxu0 0.0
        %705 = vmatprep.subr.mxu0 0.0
        %706 = vmatpush1.msra.mxu0 0.0
        %707 = vmatprep.subr.mxu0 0.0
        %708 = vmatpush1.msra.mxu0 0.0
        %709 = vmatprep.subr.mxu0 0.0
        %710 = vmatpush1.msra.mxu0 0.0
        %711 = vmatprep.subr.mxu0 0.0
        %712 = vmatpush1.msra.mxu0 0.0
        %713 = vmatprep.subr.mxu0 0.0
        %714 = vmatpush1.msra.mxu0 0.0
        %715 = vmatprep.subr.mxu0 0.0
        %716 = vmatpush1.msra.mxu0 0.0
        %717 = vmatprep.subr.mxu0 0.0
        %718 = vmatpush1.msra.mxu0 0.0
        %719 = vmatprep.subr.mxu0 0.0
        %720 = vmatpush1.msra.mxu0 0.0
        %721 = vmatprep.subr.mxu0 0.0
        %722 = vmatpush1.msra.mxu0 0.0
        %723 = vmatprep.subr.mxu0 0.0
        %724 = vmatpush1.msra.mxu0 0.0
        %725 = vmatprep.subr.mxu0 0.0
        %726 = vmatpush1.msra.mxu0 0.0
        %727 = vmatprep.subr.mxu0 0.0
        %728 = vmatpush1.msra.mxu0 0.0
        %729 = vmatprep.subr.mxu0 0.0
        %730 = vmatpush1.msra.mxu0 0.0
        %731 = vmatprep.subr.mxu0 0.0
        %732 = vmatpush1.msra.mxu0 0.0
        %733 = vmatprep.subr.mxu0 0.0
        %734 = vmatpush1.msra.mxu0 0.0
        %735 = vmatprep.subr.mxu0 0.0
        %736 = vmatpush1.msra.mxu0 0.0
        %737 = vmatprep.subr.mxu0 0.0
        %738 = vmatpush1.msra.mxu0 0.0
        %739 = vmatprep.subr.mxu0 0.0
        %740 = vmatpush1.msra.mxu0 0.0
        %741 = vmatprep.subr.mxu0 0.0
        %742 = vmatpush1.msra.mxu0 0.0
        %743 = vmatprep.subr.mxu0 0.0
        %744 = vmatpush1.msra.mxu0 0.0
        %745 = vmatprep.subr.mxu0 0.0
        %746 = vmatpush1.msra.mxu0 0.0
        %747 = vmatprep.subr.mxu0 0.0
        %748 = vmatpush1.msra.mxu0 0.0
        %749 = vmatprep.subr.mxu0 0.0
        %750 = vmatpush1.msra.mxu0 0.0
        %751 = vmatprep.subr.mxu0 0.0
        %752 = vmatpush1.msra.mxu0 0.0
        %753 = vmatprep.subr.mxu0 0.0
        %754 = vmatpush1.msra.mxu0 0.0
        %755 = vmatprep.subr.mxu0 0.0
        %756 = vmatpush1.msra.mxu0 0.0
        %757 = vmatprep.mubr.f32.mxu0 0.0
        %758 = vmatmul.mubr.f32.gmra.mrb[0].mxu0 %v565
        %v759 = vpop.f32.mrb[0].mxu0
        %v760 = vadd.f32 %v655, %v759
        %v761 = vpop.f32.mrb[0].mxu0
        %762 = vmatprep.mubr.f32.mxu0 0.0
        %763 = vmatmul.mubr.f32.gmra.mrb[0].mxu0 %v568
        %v764 = vpop.f32.mrb[0].mxu0
        %v765 = vadd.f32 %v660, %v764
        %v766 = vpop.f32.mrb[0].mxu0
        %767 = vmatprep.mubr.f32.mxu0 0.0
        %768 = vmatmul.mubr.f32.gmra.mrb[0].mxu0 %v571
        %v769 = vpop.f32.mrb[0].mxu0
        %v770 = vadd.f32 %v665, %v769
        %v771 = vpop.f32.mrb[0].mxu0
        %772 = vmatprep.mubr.f32.mxu0 0.0
        %773 = vmatmul.mubr.f32.gmra.mrb[0].mxu0 %v574
        %v774 = vpop.f32.mrb[0].mxu0
        %v775 = vadd.f32 %v670, %v774
        %v776 = vpop.f32.mrb[0].mxu0
        %777 = vmatprep.mubr.f32.mxu0 0.0
        %778 = vmatmul.mubr.f32.gmra.mrb[0].mxu0 %v577
        %v779 = vpop.f32.mrb[0].mxu0
        %v780 = vadd.f32 %v675, %v779
        %v781 = vpop.f32.mrb[0].mxu0
        %782 = vmatprep.mubr.f32.mxu0 0.0
        %783 = vmatmul.mubr.f32.gmra.mrb[0].mxu0 %v580
        %v784 = vpop.f32.mrb[0].mxu0
        %v785 = vadd.f32 %v680, %v784
        %v786 = vpop.f32.mrb[0].mxu0
        %787 = vmatprep.mubr.f32.mxu0 0.0
        %788 = vmatmul.mubr.f32.gmra.mrb[0].mxu0 %v583
        %v789 = vpop.f32.mrb[0].mxu0
        %v790 = vadd.f32 %v685, %v789
        %v791 = vpop.f32.mrb[0].mxu0
        %792 = vmatprep.mubr.f32.mxu0 0.0
        %793 = vmatmul.mubr.f32.gmra.mrb[0].mxu0 %v586
        %v794 = vpop.f32.mrb[0].mxu0
        %v795 = vadd.f32 %v690, %v794
        %v796 = vpop.f32.mrb[0].mxu0
        %797 = vdwg.mxu0
        %v798 = vxor.u32 %v760, 2147483648
        %v799 = vxor.u32 %v765, 2147483648
        %v800 = vxor.u32 %v770, 2147483648
        %v801 = vxor.u32 %v775, 2147483648
        %v802 = vxor.u32 %v780, 2147483648
        %v803 = vxor.u32 %v785, 2147483648
        %v804 = vxor.u32 %v790, 2147483648
        %v805 = vxor.u32 %v795, 2147483648
        %v806 = vmul.f32 %v798, 1.442695
        %v807 = vpow.pop %v806
        %v808 = vmul.f32 %v799, 1.442695
        %v809 = vpow.pop %v808
        %v810 = vmul.f32 %v800, 1.442695
        %v811 = vpow.pop %v810
        %v812 = vmul.f32 %v801, 1.442695
        %v813 = vpow.pop %v812
        %v814 = vmul.f32 %v802, 1.442695
        %v815 = vpow.pop %v814
        %v816 = vmul.f32 %v803, 1.442695
        %v817 = vpow.pop %v816
        %v818 = vmul.f32 %v804, 1.442695
        %v819 = vpow.pop %v818
        %v820 = vmul.f32 %v805, 1.442695
        %v821 = vpow.pop %v820
        %v822 = vadd.f32 %v807, 1.0
        %v823 = vadd.f32 %v809, 1.0
        %v824 = vadd.f32 %v811, 1.0
        %v825 = vadd.f32 %v813, 1.0
        %v826 = vadd.f32 %v815, 1.0
        %v827 = vadd.f32 %v817, 1.0
        %v828 = vadd.f32 %v819, 1.0
        %v829 = vadd.f32 %v821, 1.0
        %v830 = vrcp.pop %v822
        %v831 = vmul.f32 1.0, %v830
        %v832 = vrcp.pop %v823
        %v833 = vmul.f32 1.0, %v832
        %v834 = vrcp.pop %v824
        %v835 = vmul.f32 1.0, %v834
        %v836 = vrcp.pop %v825
        %v837 = vmul.f32 1.0, %v836
        %v838 = vrcp.pop %v826
        %v839 = vmul.f32 1.0, %v838
        %v840 = vrcp.pop %v827
        %v841 = vmul.f32 1.0, %v840
        %v842 = vrcp.pop %v828
        %v843 = vmul.f32 1.0, %v842
        %v844 = vrcp.pop %v829
        %v845 = vmul.f32 1.0, %v844
        %846 = vst.msk [vmem:[%s198] sm:$0xff] %vm276, %v831
        %847 = vst.msk [vmem:[%s198 + $0x8] sm:$0xff] %vm276, %v833
        %848 = vst.msk [vmem:[%s198 + $0x10] sm:$0xff] %vm276, %v835
        %849 = vst.msk [vmem:[%s198 + $0x18] sm:$0xff] %vm276, %v837
        %850 = vst.msk [vmem:[%s198 + $0x20] sm:$0xff] %vm276, %v839
        %851 = vst.msk [vmem:[%s198 + $0x28] sm:$0xff] %vm276, %v841
        %852 = vst.msk [vmem:[%s198 + $0x30] sm:$0xff] %vm276, %v843
        %853 = vst.msk [vmem:[%s198 + $0x38] sm:$0xff] %vm276, %v845
      $region40: #{channel_attention.2} parent=31 // pred_fallthru
        _
      %p854 = scmp.lt.s32.totalorder %s18, 1
      %s855 = scalar_select %p854, %s18, 1
      %s856 = smul.addr %s855, 8
      %s857 = smul.addr %s856, 8
      %s858 = scalar_lea.vmem %s3, %s857
      // Predicated region
      $region41: #{channel_attention.2} parent=31 // pred_check
        %p859 = pneg %p114
      $region42: #{channel_attention.2} parent=31 // pred_check_branch
        %861 = sbr.rel (%p859) target = $region44
      $region43: #{channel_attention.2} parent=31 // pred_region
        _
      $region44: #{channel_attention.2} parent=31 // pred_fallthru
        _
    $region32: #{channel_attention.2} parent=5 // pred_fallthru
      _
    %p862 = scmp.le.s32.totalorder 2, %s9
    // Predicated region
    $region45: #{channel_attention.2} parent=5 // pred_check
      %p863 = pneg %p862
    $region46: #{channel_attention.2} parent=5 // pred_check_branch
      %865 = sbr.rel (%p863) target = $region48
    $region47: #{channel_attention.2} parent=5 // pred_region
      %s866 = ssub.s32 %s9, 2
      // Predicated region
      $region49: #{channel_attention.2} parent=47 // pred_check
        %p867 = pneg %p120
      $region50: #{channel_attention.2} parent=47 // pred_check_branch
        %869 = sbr.rel (%p867) target = $region52
      $region51: #{channel_attention.2} parent=47 // pred_region
        %p870 = scmp.lt.s32.totalorder %s20, 1
        %s871 = scalar_select %p870, %s20, 1
        %s872 = smul.addr %s871, 8
        %s873 = smul.addr %s872, 8
        %s874 = scalar_lea.vmem %s3, %s873
      $region52: #{channel_attention.2} parent=47 // pred_fallthru
        _
    $region48: #{channel_attention.2} parent=5 // pred_fallthru
      _
  $region6: #{channel_attention.2} parent=0 // loop_footer
    %s13 = sadd.s32 1, %s9
  $region7: #{channel_attention.2} parent=0 // loop_footer_branch
    %8 = sbr.rel target = $region3
  $region8: #{channel_attention.2} parent=0 // loop_exit
    _

</llo_original>
